<compile_context>
chip_gen: v7x
topology: tpu7x:2x2x1
jax: 0.10.0
libtpu: 0.0.40
codegen_flags: <defaults>
</compile_context>

<pallas_src>
import functools

import jax
import jax.numpy as jnp
from jax.experimental import pallas as pl
from jax.experimental.pallas import tpu as pltpu


# -----------------------------------------------------------------------------
# Reflection padding (ReflectPad2d)
# -----------------------------------------------------------------------------
def _reflect_pad_kernel(x_ref, o_ref, *, size, H, W):
    """x_ref: (B, H, W) batch of slabs;  o_ref: (B, H+2s, W+2s)."""
    s = size
    x = x_ref[...]                                              # (B, H, W)

    # Width reflection: small static-slice lane concat (2*s one-column pieces;
    # s is 1..3 for this module, so this stays a 3..7-piece concat).
    left = [x[:, :, s - c:s - c + 1] for c in range(s)]          # cols s, s-1, ..., 1
    right = [x[:, :, W - 2 - c:W - 1 - c] for c in range(s)]     # cols W-2, ..., W-1-s
    xw = jnp.concatenate(left + [x] + right, axis=-1)            # (B, H, W+2s)

    # Height reflection WITHOUT a sublane concat: bulk interior store once,
    # then 2*s cheap single-row border stores.
    o_ref[:, s:s + H, :] = xw
    for r in range(s):
        o_ref[:, r, :] = xw[:, s - r, :]                         # top border rows
        o_ref[:, s + H + r, :] = xw[:, H - 2 - r, :]             # bottom border rows


def reflect_pad2d(x, size, *, target_tile_bytes=2 * 1024 * 1024):
    """Pallas equivalent of ReflectPad2d(size) for NCHW input."""
    if size == 0:
        return x
    N, C, H, W = x.shape
    if size > H - 1 or size > W - 1:
        raise ValueError(
            f"reflection pad size {size} must be <= spatial dims - 1 ({H - 1}, {W - 1})")
    Ho, Wo = H + 2 * size, W + 2 * size

    # Batch many (n, c) slabs per grid step so per-step DMAs are large and the
    # ~0.35us per-step overhead is amortized.
    NC = N * C
    xf = x.reshape(NC, H, W)
    itemsize = jnp.dtype(x.dtype).itemsize
    slab_bytes = (H * W + Ho * Wo) * itemsize
    cap = max(1, target_tile_bytes // slab_bytes)
    B = 1
    for d in range(1, NC + 1):                 # largest divisor of NC that fits the cap
        if NC % d == 0 and d <= cap:
            B = d
    grid = (NC // B,)

    kernel = functools.partial(_reflect_pad_kernel, size=size, H=H, W=W)
    bytes_accessed = (NC * H * W + NC * Ho * Wo) * itemsize
    out = pl.pallas_call(
        kernel,
        out_shape=jax.ShapeDtypeStruct((NC, Ho, Wo), x.dtype),
        grid=grid,
        in_specs=[pl.BlockSpec((B, H, W), lambda i: (i, 0, 0))],
        out_specs=pl.BlockSpec((B, Ho, Wo), lambda i: (i, 0, 0)),
        compiler_params=pltpu.CompilerParams(
            dimension_semantics=("parallel",),
            vmem_limit_bytes=48 * 1024 * 1024),
        cost_estimate=pl.CostEstimate(
            flops=0, transcendentals=0, bytes_accessed=bytes_accessed),
    )(xf)
    return out.reshape(N, C, Ho, Wo)


# -----------------------------------------------------------------------------
# Conv2d (no bias) + folded BatchNorm (eval mode) + ReLU / LeakyReLU
# -----------------------------------------------------------------------------
def _conv_bn_relu_kernel(xp_ref, w_ref, scale_ref, shift_ref, o_ref, *,
                         K, dilation, H, W, leak):
    """One batch element per grid step.
    xp_ref: (1, C_in, Hp, Wp); w_ref: (K*K, C_out, C_in) tap-major;
    scale_ref/shift_ref: (C_out, 1); o_ref: (1, C_out, H, W)."""
    scale = scale_ref[...]                                       # (C_out, 1)
    shift = shift_ref[...]                                       # (C_out, 1)
    for h in range(H):
        acc = None
        for ky in range(K):
            row = xp_ref[0, :, h + ky * dilation, :]             # (C_in, Wp)
            for kx in range(K):
                rhs = row[:, kx * dilation:kx * dilation + W]    # (C_in, W)
                t = jnp.dot(w_ref[ky * K + kx], rhs,
                            preferred_element_type=jnp.float32)
                acc = t if acc is None else acc + t
        y = acc * scale + shift                                  # fused BatchNorm (eval)
        if leak == 0.0:
            y = jnp.maximum(y, 0.0)
        else:
            y = jnp.where(y >= 0.0, y, y * leak)
        o_ref[0, :, h, :] = y.astype(o_ref.dtype)


def conv_bn_relu(xp, weight, scale, shift, *, dilation=1, leak=0.0):
    """Valid KxK stride-1 conv over padded input, fused scale/shift + ReLU."""
    N, C_in, Hp, Wp = xp.shape
    C_out, C_in_w, K, K2 = weight.shape
    assert C_in_w == C_in and K == K2
    # TODO(synk): stride > 1 not implemented (Conv1stLayer default is stride=1).
    span = (K - 1) * dilation
    H, W = Hp - span, Wp - span

    w_taps = jnp.transpose(weight, (2, 3, 0, 1)).reshape(K * K, C_out, C_in)
    scale2 = scale.reshape(C_out, 1).astype(jnp.float32)
    shift2 = shift.reshape(C_out, 1).astype(jnp.float32)

    kernel = functools.partial(_conv_bn_relu_kernel, K=K, dilation=dilation,
                               H=H, W=W, leak=float(leak))
    itemsize = jnp.dtype(xp.dtype).itemsize
    flops = 2 * N * C_out * C_in * K * K * H * W
    bytes_accessed = (xp.size + w_taps.size + N * C_out * H * W) * itemsize
    return pl.pallas_call(
        kernel,
        out_shape=jax.ShapeDtypeStruct((N, C_out, H, W), jnp.float32),
        grid=(N,),
        in_specs=[
            pl.BlockSpec((1, C_in, Hp, Wp), lambda n: (n, 0, 0, 0)),
            pl.BlockSpec((K * K, C_out, C_in), lambda n: (0, 0, 0)),
            pl.BlockSpec((C_out, 1), lambda n: (0, 0)),
            pl.BlockSpec((C_out, 1), lambda n: (0, 0)),
        ],
        out_specs=pl.BlockSpec((1, C_out, H, W), lambda n: (n, 0, 0, 0)),
        compiler_params=pltpu.CompilerParams(
            dimension_semantics=("parallel",)),
        cost_estimate=pl.CostEstimate(
            flops=flops, transcendentals=0, bytes_accessed=bytes_accessed),
    )(xp, w_taps, scale2, shift2)


def conv1st_layer_forward(x, weight, gamma, beta, running_mean, running_var, *,
                          kernel_size=3, dilation=1, leak=0.0, dws=False, eps=1e-5):
    """Conv1stLayer.forward: reflection pad -> conv2d(no bias) -> BatchNorm -> ReLU."""
    # TODO(synk): training-mode BatchNorm batch statistics and the 'zero'-padding
    # branch are not implemented; eval-mode affine BN (running stats folded into
    # a per-channel scale/shift) with reflection padding only.
    scale = gamma / jnp.sqrt(running_var + eps)
    shift = beta - running_mean * scale
    if dws:
        xp = x                                   # DWS path: 1x1 conv, no padding
    else:
        pad = (kernel_size // 2) * dilation
        xp = reflect_pad2d(x, pad)
    return conv_bn_relu(xp, weight, scale, shift, dilation=dilation, leak=leak)


# -----------------------------------------------------------------------------
if __name__ == "__main__":
    key = jax.random.PRNGKey(0)
    k1, k2, k3, k4, k5, k6 = jax.random.split(key, 6)

    N, C_in, H, W = 2, 4, 16, 16
    C_out, K = 8, 3
    pad = K // 2

    # Quantize conv inputs/weights to bf16-representable f32 so the MXU matmuls
    # and the XLA reference convolution agree to accumulation-order noise.
    x = jax.random.normal(k1, (N, C_in, H, W), jnp.float32)
    x = x.astype(jnp.bfloat16).astype(jnp.float32)
    w = (0.2 * jax.random.normal(k2, (C_out, C_in, K, K), jnp.float32))
    w = w.astype(jnp.bfloat16).astype(jnp.float32)
    gamma = 1.0 + 0.1 * jax.random.normal(k3, (C_out,), jnp.float32)
    beta = 0.1 * jax.random.normal(k4, (C_out,), jnp.float32)
    running_mean = 0.1 * jax.random.normal(k5, (C_out,), jnp.float32)
    running_var = jnp.abs(jax.random.normal(k6, (C_out,), jnp.float32)) + 0.5
    eps = 1e-5

    out = conv1st_layer_forward(x, w, gamma, beta, running_mean, running_var,
                                kernel_size=K, dilation=1, leak=0.0)
    out = jax.block_until_ready(out)

    # ---- pure-JAX reference (same semantics) ----
    xp_ref = jnp.pad(x, ((0, 0), (0, 0), (pad, pad), (pad, pad)), mode="reflect")
    conv_ref = jax.lax.conv_general_dilated(
        xp_ref, w, window_strides=(1, 1), padding="VALID",
        dimension_numbers=("NCHW", "OIHW", "NCHW"))
    scale_ref = gamma / jnp.sqrt(running_var + eps)
    shift_ref = beta - running_mean * scale_ref
    ref = jnp.maximum(conv_ref * scale_ref[None, :, None, None]
                      + shift_ref[None, :, None, None], 0.0)

    assert out.shape == (N, C_out, H, W)
    assert jnp.allclose(out, ref, rtol=1e-4, atol=1e-4), \
        float(jnp.max(jnp.abs(out - ref)))

    # Also verify the standalone padding kernel (exact data movement).
    padded = jax.block_until_ready(reflect_pad2d(x, pad))
    assert padded.shape == (N, C_in, H + 2 * pad, W + 2 * pad)
    assert jnp.allclose(padded, xp_ref)

    print("KERNEL_OK")
</pallas_src>

<mosaic_0001>
module attributes {stable_mosaic.version = 11 : i64} {
  func.func @_reflect_pad_kernel(%arg0: i32, %arg1: memref<8x16x16xf32, #tpu.memory_space<vmem>>, %arg2: memref<8x18x18xf32, #tpu.memory_space<vmem>>) attributes {dimension_semantics = [#tpu.dimension_semantics<parallel>], iteration_bounds = array<i64: 1>, scalar_prefetch = 0 : i64, scratch_operands = 0 : i64, tpu.core_type = #tpu.core_type<tc>, window_params = [{transform_indices = @transform_0, window_bounds = array<i64: 8, 16, 16>}, {transform_indices = @transform_1, window_bounds = array<i64: 8, 18, 18>}]} {
    %c0 = arith.constant 0 : index
    %c0_0 = arith.constant 0 : index
    %c0_1 = arith.constant 0 : index
    %0 = vector.load %arg1[%c0, %c0_0, %c0_1] : memref<8x16x16xf32, #tpu.memory_space<vmem>>, vector<8x16x16xf32>
    %1 = vector.extract_strided_slice %0 {offsets = [0, 0, 1], sizes = [8, 16, 1], strides = [1, 1, 1]} : vector<8x16x16xf32> to vector<8x16x1xf32>
    %2 = vector.extract_strided_slice %0 {offsets = [0, 0, 14], sizes = [8, 16, 1], strides = [1, 1, 1]} : vector<8x16x16xf32> to vector<8x16x1xf32>
    %3 = tpu.concatenate %1, %0, %2 in 2 : vector<8x16x1xf32>, vector<8x16x16xf32>, vector<8x16x1xf32> -> vector<8x16x18xf32>
    %c0_2 = arith.constant 0 : index
    %c1 = arith.constant 1 : index
    %c0_3 = arith.constant 0 : index
    %4 = vector.load %arg2[%c0_2, %c1, %c0_3] : memref<8x18x18xf32, #tpu.memory_space<vmem>>, vector<8x16x18xf32>
    tpu.vector_store %arg2[%c0_2, %c1, %c0_3], %3 {strides = array<i32>} : memref<8x18x18xf32, #tpu.memory_space<vmem>>, vector<8x16x18xf32>,
    %5 = vector.extract_strided_slice %3 {offsets = [0, 1, 0], sizes = [8, 1, 18], strides = [1, 1, 1]} : vector<8x16x18xf32> to vector<8x1x18xf32>
    %6 = vector.shape_cast %5 : vector<8x1x18xf32> to vector<8x18xf32>
    %c0_4 = arith.constant 0 : index
    %c0_5 = arith.constant 0 : index
    %c0_6 = arith.constant 0 : index
    %7 = vector.load %arg2[%c0_4, %c0_5, %c0_6] : memref<8x18x18xf32, #tpu.memory_space<vmem>>, vector<8x1x18xf32>
    %8 = vector.shape_cast %7 : vector<8x1x18xf32> to vector<8x18xf32>
    %9 = vector.shape_cast %6 : vector<8x18xf32> to vector<8x1x18xf32>
    tpu.vector_store %arg2[%c0_4, %c0_5, %c0_6], %9 {strides = array<i32>} : memref<8x18x18xf32, #tpu.memory_space<vmem>>, vector<8x1x18xf32>,
    %10 = vector.extract_strided_slice %3 {offsets = [0, 14, 0], sizes = [8, 1, 18], strides = [1, 1, 1]} : vector<8x16x18xf32> to vector<8x1x18xf32>
    %11 = vector.shape_cast %10 : vector<8x1x18xf32> to vector<8x18xf32>
    %c0_7 = arith.constant 0 : index
    %c17 = arith.constant 17 : index
    %c0_8 = arith.constant 0 : index
    %12 = vector.load %arg2[%c0_7, %c17, %c0_8] : memref<8x18x18xf32, #tpu.memory_space<vmem>>, vector<8x1x18xf32>
    %13 = vector.shape_cast %12 : vector<8x1x18xf32> to vector<8x18xf32>
    %14 = vector.shape_cast %11 : vector<8x18xf32> to vector<8x1x18xf32>
    tpu.vector_store %arg2[%c0_7, %c17, %c0_8], %14 {strides = array<i32>} : memref<8x18x18xf32, #tpu.memory_space<vmem>>, vector<8x1x18xf32>,
    return
  }
  func.func @transform_0(%arg0: i32) -> (i32, i32, i32) {
    %c0_i32 = arith.constant 0 : i32
    %c0_i32_0 = arith.constant 0 : i32
    %c0_i32_1 = arith.constant 0 : i32
    return %arg0, %c0_i32, %c0_i32_0 : i32, i32, i32
  }
  func.func @transform_1(%arg0: i32) -> (i32, i32, i32) {
    %c0_i32 = arith.constant 0 : i32
    %c0_i32_0 = arith.constant 0 : i32
    %c0_i32_1 = arith.constant 0 : i32
    return %arg0, %c0_i32, %c0_i32_0 : i32, i32, i32
  }
}

</mosaic_0001>

<llo_original>
// kernel: tpu_custom_call.1
$region0: #{tpu_custom_call.1}
  #allocation0 [shape = 'u32[]', space=smem, size = 0x4, offset = 0x4, fixed_abs, tag = 'smem constant byte address 0x4 - core index']
  #allocation1 [shape = 'u32[144,128]{1,0:T(1,128)}', space=vmem, size = 0x12000, scoped, tag = 'internal scratch']
  %s0 = inlined_call_operand.hbm [shape: f32[8,16,16], index: 0, kind: input, shape index: {}]
  %s1 = inlined_call_operand.vmem [shape: f32[8,18,18], index: 1, kind: output, shape index: {}]
  %s2 = sld [smem:[#allocation0]]
  $region18: #{tpu_custom_call.1} parent=0
    _
  %s4 = ssub.s32 1, %s2
  %s5 = scalar_select 0, %s4, %s2
  $region1: #{tpu_custom_call.1} parent=0
    #allocation2 [shape = 'u8[65536]{0}', space=vmem, size = 0x10000, scoped, tag = 'input window, operand 0, single buffered']
    #allocation3 [shape = 's32[1]{0}', space=sflag, size = 0x4, scoped, tag = 'scoped memory for tpu_custom_call.1']
    %6 = vsyncpa [#allocation3], 0
    // Predicated region
    $region2: #{tpu_custom_call.1} parent=1 // pred_check
      _
    $region3: #{tpu_custom_call.1} parent=1 // pred_check_branch
      %8 = sbr.rel (0) target = $region5
    $region4: #{tpu_custom_call.1} parent=1 // pred_region
      %s10 = ssub.s32 2048, 2048
      %11 = vsyncadd [#allocation3], %s10
      %s12 = sshll.u32 [#allocation2], 4
      %s13 = int_to_ptr.vmem [resolvable:$true] %s12
      %18 = dma.hbm_to_vmem [thread:$0]  %s0, 2048, %s13, [#allocation3], 128, 128, 8
    $region5: #{tpu_custom_call.1} parent=1 // pred_fallthru
      _
    // Predicated region
    $region6: #{tpu_custom_call.1} parent=1 // pred_check
      _
    $region7: #{tpu_custom_call.1} parent=1 // pred_check_branch
      %20 = sbr.rel (0) target = $region9
    $region8: #{tpu_custom_call.1} parent=1 // pred_region
      %21 = dma.done [#allocation3], 2048
    $region9: #{tpu_custom_call.1} parent=1 // pred_fallthru
      _
    %v22 = vld [vmem:[#allocation2] sm:$0xff]
    %v23 = vld [vmem:[#allocation2 + $0x8] sm:$0xff]
    %v24 = vld [vmem:[#allocation2 + $0x10] sm:$0xff]
    %v25 = vld [vmem:[#allocation2 + $0x18] sm:$0xff]
    %v26 = vld [vmem:[#allocation2 + $0x20] sm:$0xff]
    %v27 = vld [vmem:[#allocation2 + $0x28] sm:$0xff]
    %v28 = vld [vmem:[#allocation2 + $0x30] sm:$0xff]
    %v29 = vld [vmem:[#allocation2 + $0x38] sm:$0xff]
    %v30 = vld [vmem:[#allocation2 + $0x40] sm:$0xff]
    %v31 = vld [vmem:[#allocation2 + $0x48] sm:$0xff]
    %v32 = vld [vmem:[#allocation2 + $0x50] sm:$0xff]
    %v33 = vld [vmem:[#allocation2 + $0x58] sm:$0xff]
    %v34 = vld [vmem:[#allocation2 + $0x60] sm:$0xff]
    %v35 = vld [vmem:[#allocation2 + $0x68] sm:$0xff]
    %v36 = vld [vmem:[#allocation2 + $0x70] sm:$0xff]
    %v37 = vld [vmem:[#allocation2 + $0x78] sm:$0xff]
    %54 = vrot.lane.b32.xlu0 %v22, 127
    %v55 = vpop.permute.xlu0 %54
    %56 = vrot.lane.b32.xlu0 %v23, 127
    %v57 = vpop.permute.xlu0 %56
    %58 = vrot.lane.b32.xlu0 %v24, 127
    %v59 = vpop.permute.xlu0 %58
    %60 = vrot.lane.b32.xlu0 %v25, 127
    %v61 = vpop.permute.xlu0 %60
    %62 = vrot.lane.b32.xlu0 %v26, 127
    %v63 = vpop.permute.xlu0 %62
    %64 = vrot.lane.b32.xlu0 %v27, 127
    %v65 = vpop.permute.xlu0 %64
    %66 = vrot.lane.b32.xlu0 %v28, 127
    %v67 = vpop.permute.xlu0 %66
    %68 = vrot.lane.b32.xlu0 %v29, 127
    %v69 = vpop.permute.xlu0 %68
    %70 = vrot.lane.b32.xlu0 %v30, 127
    %v71 = vpop.permute.xlu0 %70
    %72 = vrot.lane.b32.xlu0 %v31, 127
    %v73 = vpop.permute.xlu0 %72
    %74 = vrot.lane.b32.xlu0 %v32, 127
    %v75 = vpop.permute.xlu0 %74
    %76 = vrot.lane.b32.xlu0 %v33, 127
    %v77 = vpop.permute.xlu0 %76
    %78 = vrot.lane.b32.xlu0 %v34, 127
    %v79 = vpop.permute.xlu0 %78
    %80 = vrot.lane.b32.xlu0 %v35, 127
    %v81 = vpop.permute.xlu0 %80
    %82 = vrot.lane.b32.xlu0 %v36, 127
    %v83 = vpop.permute.xlu0 %82
    %84 = vrot.lane.b32.xlu0 %v37, 127
    %v85 = vpop.permute.xlu0 %84
    %102 = vrot.lane.b32.xlu0 %v22, 1
    %v103 = vpop.permute.xlu0 %102
    %104 = vrot.lane.b32.xlu0 %v23, 1
    %v105 = vpop.permute.xlu0 %104
    %106 = vrot.lane.b32.xlu0 %v24, 1
    %v107 = vpop.permute.xlu0 %106
    %108 = vrot.lane.b32.xlu0 %v25, 1
    %v109 = vpop.permute.xlu0 %108
    %110 = vrot.lane.b32.xlu0 %v26, 1
    %v111 = vpop.permute.xlu0 %110
    %112 = vrot.lane.b32.xlu0 %v27, 1
    %v113 = vpop.permute.xlu0 %112
    %114 = vrot.lane.b32.xlu0 %v28, 1
    %v115 = vpop.permute.xlu0 %114
    %116 = vrot.lane.b32.xlu0 %v29, 1
    %v117 = vpop.permute.xlu0 %116
    %118 = vrot.lane.b32.xlu0 %v30, 1
    %v119 = vpop.permute.xlu0 %118
    %120 = vrot.lane.b32.xlu0 %v31, 1
    %v121 = vpop.permute.xlu0 %120
    %122 = vrot.lane.b32.xlu0 %v32, 1
    %v123 = vpop.permute.xlu0 %122
    %124 = vrot.lane.b32.xlu0 %v33, 1
    %v125 = vpop.permute.xlu0 %124
    %126 = vrot.lane.b32.xlu0 %v34, 1
    %v127 = vpop.permute.xlu0 %126
    %128 = vrot.lane.b32.xlu0 %v35, 1
    %v129 = vpop.permute.xlu0 %128
    %130 = vrot.lane.b32.xlu0 %v36, 1
    %v131 = vpop.permute.xlu0 %130
    %132 = vrot.lane.b32.xlu0 %v37, 1
    %v133 = vpop.permute.xlu0 %132
    %150 = vrot.lane.b32.xlu0 %v22, 3
    %v151 = vpop.permute.xlu0 %150
    %152 = vrot.lane.b32.xlu0 %v23, 3
    %v153 = vpop.permute.xlu0 %152
    %154 = vrot.lane.b32.xlu0 %v24, 3
    %v155 = vpop.permute.xlu0 %154
    %156 = vrot.lane.b32.xlu0 %v25, 3
    %v157 = vpop.permute.xlu0 %156
    %158 = vrot.lane.b32.xlu0 %v26, 3
    %v159 = vpop.permute.xlu0 %158
    %160 = vrot.lane.b32.xlu0 %v27, 3
    %v161 = vpop.permute.xlu0 %160
    %162 = vrot.lane.b32.xlu0 %v28, 3
    %v163 = vpop.permute.xlu0 %162
    %164 = vrot.lane.b32.xlu0 %v29, 3
    %v165 = vpop.permute.xlu0 %164
    %166 = vrot.lane.b32.xlu0 %v30, 3
    %v167 = vpop.permute.xlu0 %166
    %168 = vrot.lane.b32.xlu0 %v31, 3
    %v169 = vpop.permute.xlu0 %168
    %170 = vrot.lane.b32.xlu0 %v32, 3
    %v171 = vpop.permute.xlu0 %170
    %172 = vrot.lane.b32.xlu0 %v33, 3
    %v173 = vpop.permute.xlu0 %172
    %174 = vrot.lane.b32.xlu0 %v34, 3
    %v175 = vpop.permute.xlu0 %174
    %176 = vrot.lane.b32.xlu0 %v35, 3
    %v177 = vpop.permute.xlu0 %176
    %178 = vrot.lane.b32.xlu0 %v36, 3
    %v179 = vpop.permute.xlu0 %178
    %180 = vrot.lane.b32.xlu0 %v37, 3
    %v181 = vpop.permute.xlu0 %180
    %vm198 = vcmask 7168
    %v199 = vsel %vm198, %v55, %v103
    %v200 = vsel %vm198, %v57, %v105
    %v201 = vsel %vm198, %v59, %v107
    %v202 = vsel %vm198, %v61, %v109
    %v203 = vsel %vm198, %v63, %v111
    %v204 = vsel %vm198, %v65, %v113
    %v205 = vsel %vm198, %v67, %v115
    %v206 = vsel %vm198, %v69, %v117
    %v207 = vsel %vm198, %v71, %v119
    %v208 = vsel %vm198, %v73, %v121
    %v209 = vsel %vm198, %v75, %v123
    %v210 = vsel %vm198, %v77, %v125
    %v211 = vsel %vm198, %v79, %v127
    %v212 = vsel %vm198, %v81, %v129
    %v213 = vsel %vm198, %v83, %v131
    %v214 = vsel %vm198, %v85, %v133
    %vm215 = vcmask 138240
    %v216 = vsel %vm215, %v199, %v151
    %v217 = vsel %vm215, %v200, %v153
    %v218 = vsel %vm215, %v201, %v155
    %v219 = vsel %vm215, %v202, %v157
    %v220 = vsel %vm215, %v203, %v159
    %v221 = vsel %vm215, %v204, %v161
    %v222 = vsel %vm215, %v205, %v163
    %v223 = vsel %vm215, %v206, %v165
    %v224 = vsel %vm215, %v207, %v167
    %v225 = vsel %vm215, %v208, %v169
    %v226 = vsel %vm215, %v209, %v171
    %v227 = vsel %vm215, %v210, %v173
    %v228 = vsel %vm215, %v211, %v175
    %v229 = vsel %vm215, %v212, %v177
    %v230 = vsel %vm215, %v213, %v179
    %v231 = vsel %vm215, %v214, %v181
    %vm232 = vcmask 146432
    %233 = vst.msk [vmem:[%s1 + $0x1] sm:$0xff] %vm232, %v216
    %234 = vst.msk [vmem:[%s1 + $0x9] sm:$0xff] %vm232, %v217
    %235 = vst.msk [vmem:[%s1 + $0x19] sm:$0xff] %vm232, %v218
    %236 = vst.msk [vmem:[%s1 + $0x21] sm:$0xff] %vm232, %v219
    %237 = vst.msk [vmem:[%s1 + $0x31] sm:$0xff] %vm232, %v220
    %238 = vst.msk [vmem:[%s1 + $0x39] sm:$0xff] %vm232, %v221
    %239 = vst.msk [vmem:[%s1 + $0x49] sm:$0xff] %vm232, %v222
    %240 = vst.msk [vmem:[%s1 + $0x51] sm:$0xff] %vm232, %v223
    %241 = vst.msk [vmem:[%s1 + $0x61] sm:$0xff] %vm232, %v224
    %242 = vst.msk [vmem:[%s1 + $0x69] sm:$0xff] %vm232, %v225
    %243 = vst.msk [vmem:[%s1 + $0x79] sm:$0xff] %vm232, %v226
    %244 = vst.msk [vmem:[%s1 + $0x81] sm:$0xff] %vm232, %v227
    %245 = vst.msk [vmem:[%s1 + $0x91] sm:$0xff] %vm232, %v228
    %246 = vst.msk [vmem:[%s1 + $0x99] sm:$0xff] %vm232, %v229
    %247 = vst.msk [vmem:[%s1 + $0xa9] sm:$0xff] %vm232, %v230
    %248 = vst.msk [vmem:[%s1 + $0xb1] sm:$0xff] %vm232, %v231
    %vm249 = vcmask 140289
    %250 = vst.msk [vmem:[%s1 - $0x1] sm:$0x2] %vm249, %v216
    %251 = vst.msk [vmem:[%s1 + $0x17] sm:$0x2] %vm249, %v218
    %252 = vst.msk [vmem:[%s1 + $0x2f] sm:$0x2] %vm249, %v220
    %253 = vst.msk [vmem:[%s1 + $0x47] sm:$0x2] %vm249, %v222
    %254 = vst.msk [vmem:[%s1 + $0x5f] sm:$0x2] %vm249, %v224
    %255 = vst.msk [vmem:[%s1 + $0x77] sm:$0x2] %vm249, %v226
    %256 = vst.msk [vmem:[%s1 + $0x8f] sm:$0x2] %vm249, %v228
    %257 = vst.msk [vmem:[%s1 + $0xa7] sm:$0x2] %vm249, %v230
    %vm258 = vcmask 145414
    %259 = vst.msk [vmem:[%s1 + $0xb] sm:$0x40] %vm258, %v217
    %260 = vst.msk [vmem:[%s1 + $0x23] sm:$0x40] %vm258, %v219
    %261 = vst.msk [vmem:[%s1 + $0x3b] sm:$0x40] %vm258, %v221
    %262 = vst.msk [vmem:[%s1 + $0x53] sm:$0x40] %vm258, %v223
    %263 = vst.msk [vmem:[%s1 + $0x6b] sm:$0x40] %vm258, %v225
    %264 = vst.msk [vmem:[%s1 + $0x83] sm:$0x40] %vm258, %v227
    %265 = vst.msk [vmem:[%s1 + $0x9b] sm:$0x40] %vm258, %v229
    %266 = vst.msk [vmem:[%s1 + $0xb3] sm:$0x40] %vm258, %v231
    // Predicated region
    $region10: #{tpu_custom_call.1} parent=1 // pred_check
      _
    $region11: #{tpu_custom_call.1} parent=1 // pred_check_branch
      %268 = sbr.rel (0) target = $region13
    $region12: #{tpu_custom_call.1} parent=1 // pred_region
      _
    $region13: #{tpu_custom_call.1} parent=1 // pred_fallthru
      _
    // Predicated region
    $region14: #{tpu_custom_call.1} parent=1 // pred_check
      _
    $region15: #{tpu_custom_call.1} parent=1 // pred_check_branch
      %270 = sbr.rel (0) target = $region17
    $region16: #{tpu_custom_call.1} parent=1 // pred_region
      _
    $region17: #{tpu_custom_call.1} parent=1 // pred_fallthru
      _
    %271 = vsyncpa [#allocation3], 1

</llo_original>
